<compile_context>
chip_gen: v7x
topology: tpu7x:2x2x1
jax: 0.10.0
libtpu: 0.0.40
codegen_flags: <defaults>
</compile_context>

<pallas_src>
import functools

import jax
import jax.numpy as jnp
from jax.experimental import pallas as pl
from jax.experimental.pallas import tpu as pltpu

GMF_DIM = 8
MLP_DIM = 8
MLP_HIDDEN = (16, 8, 4)


def _round_up(x, m):
    return (x + m - 1) // m * m


def ncf_kernel(
    user_ref, item_ref,          # (16, Bt) bf16 merged [gmf | mlp] embedding tiles
    w1_ref, b1_ref,              # (16, 16), (16, 1)   MLP layer 1
    w2_ref, b2_ref,              # (8, 16),  (8, 1)    MLP layer 2
    w3_ref, b3_ref,              # (4, 8),   (4, 1)    MLP layer 3
    wfg_ref, wfm_ref, bf_ref,    # (8, 1), (4, 1), (1, 1) fusion Linear(12 -> 1)
    out_ref,                     # (1, Bt) f32 probabilities (lane-dense)
):
    # Stream bf16 from HBM, compute in f32 (v5e VPU has no bf16; keeps parity
    # with the f32 PyTorch module).
    u = user_ref[...].astype(jnp.float32)            # (16, Bt)
    v = item_ref[...].astype(jnp.float32)            # (16, Bt)

    # GMF branch: elementwise interaction of the gmf halves.
    gmf = u[:GMF_DIM, :] * v[:GMF_DIM, :]            # (8, Bt)

    # MLP branch: concat along the feature (sublane) axis -> single layer-1 dot.
    mlp_in = jnp.concatenate([u[GMF_DIM:, :], v[GMF_DIM:, :]], axis=0)  # (16, Bt)

    h = jnp.dot(w1_ref[...], mlp_in, preferred_element_type=jnp.float32) + b1_ref[...]
    h = jnp.maximum(h, 0.0)
    # TODO(synk): dropout layers are identity here (inference semantics).
    h = jnp.dot(w2_ref[...], h, preferred_element_type=jnp.float32) + b2_ref[...]
    h = jnp.maximum(h, 0.0)
    h = jnp.dot(w3_ref[...], h, preferred_element_type=jnp.float32) + b3_ref[...]
    h = jnp.maximum(h, 0.0)                          # (4, Bt)

    # Fusion Linear(gmf_dim + mlp_hidden[-1] -> 1): done on VPU + sublane reduce
    # (an N=1 / M=1 MXU matmul would waste the systolic array). Result is already
    # lane-dense (1, Bt) so the store is unmasked.
    logit = (
        jnp.sum(gmf * wfg_ref[...], axis=0, keepdims=True)
        + jnp.sum(h * wfm_ref[...], axis=0, keepdims=True)
        + bf_ref[...]
    )                                                # (1, Bt)
    out_ref[...] = jax.nn.sigmoid(logit)


@functools.partial(jax.jit, static_argnames=("block_b",))
def ncf_forward(user_ids, item_ids, params, *, block_b=1024):
    """Runs the NCF forward pass. Returns a (B,) array of probabilities."""
    # Two merged-table gathers (16-wide bf16 rows) instead of four 8-wide f32 ones.
    u = jnp.take(params["user_embed"], user_ids, axis=0, mode="clip")   # (B, 16) bf16
    v = jnp.take(params["item_embed"], item_ids, axis=0, mode="clip")   # (B, 16) bf16

    B = user_ids.shape[0]
    bt = min(block_b, _round_up(B, 128))      # lane-aligned batch tile
    b_pad = _round_up(B, bt)
    if b_pad != B:
        pad = ((0, b_pad - B), (0, 0))
        u = jnp.pad(u, pad)
        v = jnp.pad(v, pad)

    # Feature-major layout: batch on the 128-lane axis.
    u_t = u.T                                  # (16, b_pad)
    v_t = v.T                                  # (16, b_pad)
    n_tiles = b_pad // bt

    emb_spec = pl.BlockSpec((16, bt), lambda i: (0, i))

    def const(shape):
        # Weights/biases: one block, resident in VMEM across all grid steps.
        return pl.BlockSpec(shape, lambda i: (0, 0))

    cost = pl.CostEstimate(
        flops=int(864 * b_pad),                # 2*(16*16 + 16*8 + 8*4) + gmf + fusion per row
        transcendentals=int(b_pad),            # sigmoid
        bytes_accessed=int(b_pad * 68 + 2048), # 2 x 16 bf16 in + 1 f32 out per row + weights
    )

    out = pl.pallas_call(
        ncf_kernel,
        out_shape=jax.ShapeDtypeStruct((1, b_pad), jnp.float32),
        grid=(n_tiles,),
        in_specs=[
            emb_spec, emb_spec,
            const((16, 16)), const((16, 1)),
            const((8, 16)), const((8, 1)),
            const((4, 8)), const((4, 1)),
            const((8, 1)), const((4, 1)), const((1, 1)),
        ],
        out_specs=pl.BlockSpec((1, bt), lambda i: (0, i)),
        compiler_params=pltpu.CompilerParams(dimension_semantics=("parallel",)),
        cost_estimate=cost,
    )(
        u_t, v_t,
        params["w1"], params["b1"],
        params["w2"], params["b2"],
        params["w3"], params["b3"],
        params["wfg"], params["wfm"], params["bf"],
    )
    return out.reshape(-1)[:B]


def init_params(key, num_users, num_items, gmf_dim=8, mlp_dim=8,
                mlp_hidden=(16, 8, 4)):
    """Deterministic parameter init mirroring the PyTorch module's shapes."""
    ks = jax.random.split(key, 8)
    f32 = jnp.float32

    def xavier(k, fan_out, fan_in):
        limit = float(jnp.sqrt(6.0 / (fan_in + fan_out)))
        return jax.random.uniform(k, (fan_out, fan_in), f32, -limit, limit)

    gmf_u = 0.01 * jax.random.normal(ks[0], (num_users + 1, gmf_dim), f32)
    gmf_i = 0.01 * jax.random.normal(ks[1], (num_items + 1, gmf_dim), f32)
    mlp_u = 0.01 * jax.random.normal(ks[2], (num_users + 1, mlp_dim), f32)
    mlp_i = 0.01 * jax.random.normal(ks[3], (num_items + 1, mlp_dim), f32)

    params = {
        # Merged per-entity tables [gmf | mlp], stored bf16 (halves gather bytes).
        "user_embed": jnp.concatenate([gmf_u, mlp_u], axis=1).astype(jnp.bfloat16),
        "item_embed": jnp.concatenate([gmf_i, mlp_i], axis=1).astype(jnp.bfloat16),
        # Weights kept in PyTorch (out, in) orientation: kernel computes W @ x.
        "w1": xavier(ks[4], mlp_hidden[0], 2 * mlp_dim),
        "b1": jnp.zeros((mlp_hidden[0], 1), f32),
        "w2": xavier(ks[5], mlp_hidden[1], mlp_hidden[0]),
        "b2": jnp.zeros((mlp_hidden[1], 1), f32),
        "w3": xavier(ks[6], mlp_hidden[2], mlp_hidden[1]),
        "b3": jnp.zeros((mlp_hidden[2], 1), f32),
    }

    # Fusion Linear(gmf_dim + mlp_hidden[-1] -> 1), kaiming_uniform a=1 / sigmoid gain.
    fusion_in = gmf_dim + mlp_hidden[-1]
    limit = float(jnp.sqrt(3.0 / fusion_in))
    wf = jax.random.uniform(ks[7], (1, fusion_in), f32, -limit, limit)
    params["wfg"] = wf[:, :gmf_dim].T          # (8, 1)
    params["wfm"] = wf[:, gmf_dim:].T          # (4, 1)
    params["bf"] = jnp.zeros((1, 1), f32)
    return params


if __name__ == "__main__":
    num_users, num_items = 10, 20
    batch = 8

    key = jax.random.PRNGKey(0)
    kp, ku, ki = jax.random.split(key, 3)
    params = init_params(kp, num_users, num_items)
    user_ids = jax.random.randint(ku, (batch,), 0, num_users + 1, dtype=jnp.int32)
    item_ids = jax.random.randint(ki, (batch,), 0, num_items + 1, dtype=jnp.int32)

    out = ncf_forward(user_ids, item_ids, params)
    jax.block_until_ready(out)
    assert out.shape == (batch,)
    assert bool(jnp.all((out >= 0.0) & (out <= 1.0)))
    print("KERNEL_OK")
</pallas_src>

<mosaic_0001>
module attributes {stable_mosaic.version = 11 : i64} {
  func.func @ncf_kernel(%arg0: i32, %arg1: memref<16x128xbf16, #tpu.memory_space<vmem>>, %arg2: memref<16x128xbf16, #tpu.memory_space<vmem>>, %arg3: memref<16x16xf32, #tpu.memory_space<vmem>>, %arg4: memref<16x1xf32, #tpu.memory_space<vmem>>, %arg5: memref<8x16xf32, #tpu.memory_space<vmem>>, %arg6: memref<8x1xf32, #tpu.memory_space<vmem>>, %arg7: memref<4x8xf32, #tpu.memory_space<vmem>>, %arg8: memref<4x1xf32, #tpu.memory_space<vmem>>, %arg9: memref<8x1xf32, #tpu.memory_space<vmem>>, %arg10: memref<4x1xf32, #tpu.memory_space<vmem>>, %arg11: memref<1x1xf32, #tpu.memory_space<vmem>>, %arg12: memref<1x128xf32, #tpu.memory_space<vmem>>) attributes {dimension_semantics = [#tpu.dimension_semantics<parallel>], iteration_bounds = array<i64: 1>, scalar_prefetch = 0 : i64, scratch_operands = 0 : i64, tpu.core_type = #tpu.core_type<tc>, window_params = [{transform_indices = @transform_0, window_bounds = array<i64: 16, 128>}, {transform_indices = @transform_1, window_bounds = array<i64: 16, 128>}, {pipeline_mode = #tpu.pipeline_mode<synchronous>, transform_indices = @transform_2, window_bounds = array<i64: 16, 16>}, {pipeline_mode = #tpu.pipeline_mode<synchronous>, transform_indices = @transform_3, window_bounds = array<i64: 16, 1>}, {pipeline_mode = #tpu.pipeline_mode<synchronous>, transform_indices = @transform_4, window_bounds = array<i64: 8, 16>}, {pipeline_mode = #tpu.pipeline_mode<synchronous>, transform_indices = @transform_5, window_bounds = array<i64: 8, 1>}, {pipeline_mode = #tpu.pipeline_mode<synchronous>, transform_indices = @transform_6, window_bounds = array<i64: 4, 8>}, {pipeline_mode = #tpu.pipeline_mode<synchronous>, transform_indices = @transform_7, window_bounds = array<i64: 4, 1>}, {pipeline_mode = #tpu.pipeline_mode<synchronous>, transform_indices = @transform_8, window_bounds = array<i64: 8, 1>}, {pipeline_mode = #tpu.pipeline_mode<synchronous>, transform_indices = @transform_9, window_bounds = array<i64: 4, 1>}, {pipeline_mode = #tpu.pipeline_mode<synchronous>, transform_indices = @transform_10, window_bounds = array<i64: 1, 1>}, {transform_indices = @transform_11, window_bounds = array<i64: 1, 128>}]} {
    %c0 = arith.constant 0 : index
    %c0_0 = arith.constant 0 : index
    %0 = vector.load %arg1[%c0, %c0_0] : memref<16x128xbf16, #tpu.memory_space<vmem>>, vector<16x128xbf16>
    %1 = arith.extf %0 : vector<16x128xbf16> to vector<16x128xf32>
    %c0_1 = arith.constant 0 : index
    %c0_2 = arith.constant 0 : index
    %2 = vector.load %arg2[%c0_1, %c0_2] : memref<16x128xbf16, #tpu.memory_space<vmem>>, vector<16x128xbf16>
    %3 = arith.extf %2 : vector<16x128xbf16> to vector<16x128xf32>
    %4 = vector.extract_strided_slice %1 {offsets = [0, 0], sizes = [8, 128], strides = [1, 1]} : vector<16x128xf32> to vector<8x128xf32>
    %5 = vector.extract_strided_slice %3 {offsets = [0, 0], sizes = [8, 128], strides = [1, 1]} : vector<16x128xf32> to vector<8x128xf32>
    %6 = arith.mulf %4, %5 : vector<8x128xf32>
    %7 = vector.extract_strided_slice %1 {offsets = [8, 0], sizes = [8, 128], strides = [1, 1]} : vector<16x128xf32> to vector<8x128xf32>
    %8 = vector.extract_strided_slice %3 {offsets = [8, 0], sizes = [8, 128], strides = [1, 1]} : vector<16x128xf32> to vector<8x128xf32>
    %9 = tpu.concatenate %7, %8 in 0 : vector<8x128xf32>, vector<8x128xf32> -> vector<16x128xf32>
    %c0_3 = arith.constant 0 : index
    %c0_4 = arith.constant 0 : index
    %10 = vector.load %arg3[%c0_3, %c0_4] : memref<16x16xf32, #tpu.memory_space<vmem>>, vector<16x16xf32>
    %cst = arith.constant dense<0.000000e+00> : vector<16x128xf32>
    %11 = tpu.matmul %10, %9, %cst {dimension_numbers = #tpu.dot_dimension_numbers<[1], [0], [0], [1], [0, 0, 1, 1], [], []>} : vector<16x16xf32>, vector<16x128xf32>, vector<16x128xf32> -> vector<16x128xf32>
    %c0_5 = arith.constant 0 : index
    %c0_6 = arith.constant 0 : index
    %12 = vector.load %arg4[%c0_5, %c0_6] : memref<16x1xf32, #tpu.memory_space<vmem>>, vector<16x1xf32>
    %13 = vector.broadcast %12 : vector<16x1xf32> to vector<16x128xf32>
    %14 = arith.addf %11, %13 : vector<16x128xf32>
    %cst_7 = arith.constant 0.000000e+00 : f32
    %15 = vector.broadcast %cst_7 : f32 to vector<16x128xf32>
    %16 = arith.maximumf %14, %15 : vector<16x128xf32>
    %c0_8 = arith.constant 0 : index
    %c0_9 = arith.constant 0 : index
    %17 = vector.load %arg5[%c0_8, %c0_9] : memref<8x16xf32, #tpu.memory_space<vmem>>, vector<8x16xf32>
    %cst_10 = arith.constant dense<0.000000e+00> : vector<8x128xf32>
    %18 = tpu.matmul %17, %16, %cst_10 {dimension_numbers = #tpu.dot_dimension_numbers<[1], [0], [0], [1], [0, 0, 1, 1], [], []>} : vector<8x16xf32>, vector<16x128xf32>, vector<8x128xf32> -> vector<8x128xf32>
    %c0_11 = arith.constant 0 : index
    %c0_12 = arith.constant 0 : index
    %19 = vector.load %arg6[%c0_11, %c0_12] : memref<8x1xf32, #tpu.memory_space<vmem>>, vector<8x1xf32>
    %20 = vector.broadcast %19 : vector<8x1xf32> to vector<8x128xf32>
    %21 = arith.addf %18, %20 : vector<8x128xf32>
    %cst_13 = arith.constant 0.000000e+00 : f32
    %22 = vector.broadcast %cst_13 : f32 to vector<8x128xf32>
    %23 = arith.maximumf %21, %22 : vector<8x128xf32>
    %c0_14 = arith.constant 0 : index
    %c0_15 = arith.constant 0 : index
    %24 = vector.load %arg7[%c0_14, %c0_15] : memref<4x8xf32, #tpu.memory_space<vmem>>, vector<4x8xf32>
    %cst_16 = arith.constant dense<0.000000e+00> : vector<4x128xf32>
    %25 = tpu.matmul %24, %23, %cst_16 {dimension_numbers = #tpu.dot_dimension_numbers<[1], [0], [0], [1], [0, 0, 1, 1], [], []>} : vector<4x8xf32>, vector<8x128xf32>, vector<4x128xf32> -> vector<4x128xf32>
    %c0_17 = arith.constant 0 : index
    %c0_18 = arith.constant 0 : index
    %26 = vector.load %arg8[%c0_17, %c0_18] : memref<4x1xf32, #tpu.memory_space<vmem>>, vector<4x1xf32>
    %27 = vector.broadcast %26 : vector<4x1xf32> to vector<4x128xf32>
    %28 = arith.addf %25, %27 : vector<4x128xf32>
    %cst_19 = arith.constant 0.000000e+00 : f32
    %29 = vector.broadcast %cst_19 : f32 to vector<4x128xf32>
    %30 = arith.maximumf %28, %29 : vector<4x128xf32>
    %c0_20 = arith.constant 0 : index
    %c0_21 = arith.constant 0 : index
    %31 = vector.load %arg9[%c0_20, %c0_21] : memref<8x1xf32, #tpu.memory_space<vmem>>, vector<8x1xf32>
    %32 = vector.broadcast %31 : vector<8x1xf32> to vector<8x128xf32>
    %33 = arith.mulf %6, %32 : vector<8x128xf32>
    %cst_22 = arith.constant dense<0.000000e+00> : vector<128xf32>
    %34 = vector.multi_reduction <add>, %33, %cst_22 [0] : vector<8x128xf32> to vector<128xf32>
    %35 = vector.shape_cast %34 : vector<128xf32> to vector<1x128xf32>
    %c0_23 = arith.constant 0 : index
    %c0_24 = arith.constant 0 : index
    %36 = vector.load %arg10[%c0_23, %c0_24] : memref<4x1xf32, #tpu.memory_space<vmem>>, vector<4x1xf32>
    %37 = vector.broadcast %36 : vector<4x1xf32> to vector<4x128xf32>
    %38 = arith.mulf %30, %37 : vector<4x128xf32>
    %cst_25 = arith.constant dense<0.000000e+00> : vector<128xf32>
    %39 = vector.multi_reduction <add>, %38, %cst_25 [0] : vector<4x128xf32> to vector<128xf32>
    %40 = vector.shape_cast %39 : vector<128xf32> to vector<1x128xf32>
    %41 = arith.addf %35, %40 : vector<1x128xf32>
    %c0_26 = arith.constant 0 : index
    %c0_27 = arith.constant 0 : index
    %42 = vector.load %arg11[%c0_26, %c0_27] : memref<1x1xf32, #tpu.memory_space<vmem>>, vector<1x1xf32>
    %43 = vector.broadcast %42 : vector<1x1xf32> to vector<1x128xf32>
    %44 = arith.addf %41, %43 : vector<1x128xf32>
    %45 = arith.negf %44 : vector<1x128xf32>
    %46 = math.exp %45 : vector<1x128xf32>
    %cst_28 = arith.constant 1.000000e+00 : f32
    %47 = vector.broadcast %cst_28 : f32 to vector<1x128xf32>
    %48 = arith.addf %47, %46 : vector<1x128xf32>
    %49 = arith.divf %47, %48 : vector<1x128xf32>
    %c0_29 = arith.constant 0 : index
    %c0_30 = arith.constant 0 : index
    %50 = vector.load %arg12[%c0_29, %c0_30] : memref<1x128xf32, #tpu.memory_space<vmem>>, vector<1x128xf32>
    tpu.vector_store %arg12[%c0_29, %c0_30], %49 {strides = array<i32>} : memref<1x128xf32, #tpu.memory_space<vmem>>, vector<1x128xf32>,
    return
  }
  func.func @transform_0(%arg0: i32) -> (i32, i32) {
    %c0_i32 = arith.constant 0 : i32
    %c0_i32_0 = arith.constant 0 : i32
    return %c0_i32, %arg0 : i32, i32
  }
  func.func @transform_1(%arg0: i32) -> (i32, i32) {
    %c0_i32 = arith.constant 0 : i32
    %c0_i32_0 = arith.constant 0 : i32
    return %c0_i32, %arg0 : i32, i32
  }
  func.func @transform_2(%arg0: i32) -> (i32, i32) {
    %c0_i32 = arith.constant 0 : i32
    %c0_i32_0 = arith.constant 0 : i32
    %c0_i32_1 = arith.constant 0 : i32
    return %c0_i32, %c0_i32_0 : i32, i32
  }
  func.func @transform_3(%arg0: i32) -> (i32, i32) {
    %c0_i32 = arith.constant 0 : i32
    %c0_i32_0 = arith.constant 0 : i32
    %c0_i32_1 = arith.constant 0 : i32
    return %c0_i32, %c0_i32_0 : i32, i32
  }
  func.func @transform_4(%arg0: i32) -> (i32, i32) {
    %c0_i32 = arith.constant 0 : i32
    %c0_i32_0 = arith.constant 0 : i32
    %c0_i32_1 = arith.constant 0 : i32
    return %c0_i32, %c0_i32_0 : i32, i32
  }
  func.func @transform_5(%arg0: i32) -> (i32, i32) {
    %c0_i32 = arith.constant 0 : i32
    %c0_i32_0 = arith.constant 0 : i32
    %c0_i32_1 = arith.constant 0 : i32
    return %c0_i32, %c0_i32_0 : i32, i32
  }
  func.func @transform_6(%arg0: i32) -> (i32, i32) {
    %c0_i32 = arith.constant 0 : i32
    %c0_i32_0 = arith.constant 0 : i32
    %c0_i32_1 = arith.constant 0 : i32
    return %c0_i32, %c0_i32_0 : i32, i32
  }
  func.func @transform_7(%arg0: i32) -> (i32, i32) {
    %c0_i32 = arith.constant 0 : i32
    %c0_i32_0 = arith.constant 0 : i32
    %c0_i32_1 = arith.constant 0 : i32
    return %c0_i32, %c0_i32_0 : i32, i32
  }
  func.func @transform_8(%arg0: i32) -> (i32, i32) {
    %c0_i32 = arith.constant 0 : i32
    %c0_i32_0 = arith.constant 0 : i32
    %c0_i32_1 = arith.constant 0 : i32
    return %c0_i32, %c0_i32_0 : i32, i32
  }
  func.func @transform_9(%arg0: i32) -> (i32, i32) {
    %c0_i32 = arith.constant 0 : i32
    %c0_i32_0 = arith.constant 0 : i32
    %c0_i32_1 = arith.constant 0 : i32
    return %c0_i32, %c0_i32_0 : i32, i32
  }
  func.func @transform_10(%arg0: i32) -> (i32, i32) {
    %c0_i32 = arith.constant 0 : i32
    %c0_i32_0 = arith.constant 0 : i32
    %c0_i32_1 = arith.constant 0 : i32
    return %c0_i32, %c0_i32_0 : i32, i32
  }
  func.func @transform_11(%arg0: i32) -> (i32, i32) {
    %c0_i32 = arith.constant 0 : i32
    %c0_i32_0 = arith.constant 0 : i32
    return %c0_i32, %arg0 : i32, i32
  }
}

</mosaic_0001>

<llo_original>
// kernel: ncf_forward.1
$region0: #{ncf_forward.1}
  #allocation0 [shape = 'u32[]', space=smem, size = 0x4, offset = 0x4, fixed_abs, tag = 'smem constant byte address 0x4 - core index']
  #allocation1 [shape = 'u32[144,128]{1,0:T(1,128)}', space=vmem, size = 0x12000, scoped, tag = 'internal scratch']
  #allocation2 [shape = 'f32[1,1]{1,0:T(1,128)S(1)}', space=vmem, size = 0x200, scoped, tag = 'scoped memory for ncf_forward.1']
  %s0 = inlined_call_operand.vmem [shape: bf16[16,128], index: 0, kind: input, shape index: {}]
  %s1 = inlined_call_operand.vmem [shape: bf16[16,128], index: 1, kind: input, shape index: {}]
  %s2 = inlined_call_operand.vmem [shape: f32[16,16], index: 2, kind: input, shape index: {}]
  %s3 = inlined_call_operand.vmem [shape: f32[16,1], index: 3, kind: input, shape index: {}]
  %s4 = inlined_call_operand.vmem [shape: f32[8,16], index: 4, kind: input, shape index: {}]
  %s5 = inlined_call_operand.vmem [shape: f32[8,1], index: 5, kind: input, shape index: {}]
  %s6 = inlined_call_operand.vmem [shape: f32[4,8], index: 6, kind: input, shape index: {}]
  %s7 = inlined_call_operand.vmem [shape: f32[4,1], index: 7, kind: input, shape index: {}]
  %s8 = inlined_call_operand.vmem [shape: f32[8,1], index: 8, kind: input, shape index: {}]
  %s9 = inlined_call_operand.vmem [shape: f32[4,1], index: 9, kind: input, shape index: {}]
  %s10 = inlined_call_operand.<no memory space> [shape: f32[1,1], index: 10, kind: input, shape index: {}]
  %s11 = inlined_call_operand.vmem [shape: f32[1,128], index: 11, kind: output, shape index: {}]
  %s12 = sld [smem:[#allocation0]]
  $region54: #{ncf_forward.1} parent=0
    _
  %s14 = ssub.s32 1, %s12
  %s15 = scalar_select 0, %s14, %s12
  %v16 = vstv %s10
  %17 = vst [vmem:[#allocation2] sm:$0x1] %v16
  // Predicated region
  $region2: #{ncf_forward.1} parent=0 // pred_check
    _
  $region3: #{ncf_forward.1} parent=0 // pred_check_branch
    %19 = sbr.rel (0) target = $region5
  $region4: #{ncf_forward.1} parent=0 // pred_region
    _
  $region5: #{ncf_forward.1} parent=0 // pred_fallthru
    _
  // Predicated region
  $region6: #{ncf_forward.1} parent=0 // pred_check
    _
  $region7: #{ncf_forward.1} parent=0 // pred_check_branch
    %21 = sbr.rel (0) target = $region9
  $region8: #{ncf_forward.1} parent=0 // pred_region
    _
  $region9: #{ncf_forward.1} parent=0 // pred_fallthru
    _
  // Predicated region
  $region10: #{ncf_forward.1} parent=0 // pred_check
    _
  $region11: #{ncf_forward.1} parent=0 // pred_check_branch
    %23 = sbr.rel (0) target = $region13
  $region12: #{ncf_forward.1} parent=0 // pred_region
    _
  $region13: #{ncf_forward.1} parent=0 // pred_fallthru
    _
  // Predicated region
  $region14: #{ncf_forward.1} parent=0 // pred_check
    _
  $region15: #{ncf_forward.1} parent=0 // pred_check_branch
    %25 = sbr.rel (0) target = $region17
  $region16: #{ncf_forward.1} parent=0 // pred_region
    _
  $region17: #{ncf_forward.1} parent=0 // pred_fallthru
    _
  // Predicated region
  $region18: #{ncf_forward.1} parent=0 // pred_check
    _
  $region19: #{ncf_forward.1} parent=0 // pred_check_branch
    %27 = sbr.rel (0) target = $region21
  $region20: #{ncf_forward.1} parent=0 // pred_region
    _
  $region21: #{ncf_forward.1} parent=0 // pred_fallthru
    _
  // Predicated region
  $region22: #{ncf_forward.1} parent=0 // pred_check
    _
  $region23: #{ncf_forward.1} parent=0 // pred_check_branch
    %29 = sbr.rel (0) target = $region25
  $region24: #{ncf_forward.1} parent=0 // pred_region
    _
  $region25: #{ncf_forward.1} parent=0 // pred_fallthru
    _
  // Predicated region
  $region26: #{ncf_forward.1} parent=0 // pred_check
    _
  $region27: #{ncf_forward.1} parent=0 // pred_check_branch
    %31 = sbr.rel (0) target = $region29
  $region28: #{ncf_forward.1} parent=0 // pred_region
    _
  $region29: #{ncf_forward.1} parent=0 // pred_fallthru
    _
  // Predicated region
  $region30: #{ncf_forward.1} parent=0 // pred_check
    _
  $region31: #{ncf_forward.1} parent=0 // pred_check_branch
    %33 = sbr.rel (0) target = $region33
  $region32: #{ncf_forward.1} parent=0 // pred_region
    _
  $region33: #{ncf_forward.1} parent=0 // pred_fallthru
    _
  // Predicated region
  $region34: #{ncf_forward.1} parent=0 // pred_check
    _
  $region35: #{ncf_forward.1} parent=0 // pred_check_branch
    %35 = sbr.rel (0) target = $region37
  $region36: #{ncf_forward.1} parent=0 // pred_region
    _
  $region37: #{ncf_forward.1} parent=0 // pred_fallthru
    _
  // Predicated region
  $region38: #{ncf_forward.1} parent=0 // pred_check
    _
  $region39: #{ncf_forward.1} parent=0 // pred_check_branch
    %37 = sbr.rel (0) target = $region41
  $region40: #{ncf_forward.1} parent=0 // pred_region
    _
  $region41: #{ncf_forward.1} parent=0 // pred_fallthru
    _
  // Predicated region
  $region42: #{ncf_forward.1} parent=0 // pred_check
    _
  $region43: #{ncf_forward.1} parent=0 // pred_check_branch
    %39 = sbr.rel (0) target = $region45
  $region44: #{ncf_forward.1} parent=0 // pred_region
    _
  $region45: #{ncf_forward.1} parent=0 // pred_fallthru
    _
  %v40 = vld [vmem:[%s0] sm:$0xf]
  %v41 = vld [vmem:[%s0 + $0x4] sm:$0xf]
  %v42 = vunpack.c.l.bf16 %v40
  %v43 = vunpack.c.l.bf16 %v41
  %v44 = vld [vmem:[%s1] sm:$0xf]
  %v45 = vld [vmem:[%s1 + $0x4] sm:$0xf]
  %v46 = vunpack.c.l.bf16 %v44
  %v47 = vunpack.c.l.bf16 %v45
  %v48 = vmul.f32 %v42, %v46
  %v49 = vld [vmem:[%s2] sm:$0xff]
  %v50 = vld [vmem:[%s2 + $0x8] sm:$0xff]
  %v51 = vld [vmem:[%s3] sm:$0xff]
  %v52 = vld [vmem:[%s3 + $0x8] sm:$0xff]
  %54 = vset.pattern.permute.xlu0 0
  %55 = vperm.xlu0 %54, %v51
  %v56 = vpop.permute.xlu0 %55
  %59 = vset.pattern.permute.xlu0 0
  %60 = vperm.xlu0 %59, %v52
  %v61 = vpop.permute.xlu0 %60
  %vm63 = vcmask 130048
  %v65 = vsel %vm63, %v49, 0
  %v68 = vsel %vm63, %v50, 0
  %70 = vmatprep.subr.mxu0 0.0
  %71 = vmatpush1.msra.mxu0 %v43
  %72 = vmatprep.subr.mxu0 0.0
  %73 = vmatpush1.msra.mxu0 %v47
  %74 = vmatprep.subr.mxu0 0.0
  %75 = vmatpush1.msra.mxu0 0.0
  %76 = vmatprep.subr.mxu0 0.0
  %77 = vmatpush1.msra.mxu0 0.0
  %78 = vmatprep.subr.mxu0 0.0
  %79 = vmatpush1.msra.mxu0 0.0
  %80 = vmatprep.subr.mxu0 0.0
  %81 = vmatpush1.msra.mxu0 0.0
  %82 = vmatprep.subr.mxu0 0.0
  %83 = vmatpush1.msra.mxu0 0.0
  %84 = vmatprep.subr.mxu0 0.0
  %85 = vmatpush1.msra.mxu0 0.0
  %86 = vmatprep.subr.mxu0 0.0
  %87 = vmatpush1.msra.mxu0 0.0
  %88 = vmatprep.subr.mxu0 0.0
  %89 = vmatpush1.msra.mxu0 0.0
  %90 = vmatprep.subr.mxu0 0.0
  %91 = vmatpush1.msra.mxu0 0.0
  %92 = vmatprep.subr.mxu0 0.0
  %93 = vmatpush1.msra.mxu0 0.0
  %94 = vmatprep.subr.mxu0 0.0
  %95 = vmatpush1.msra.mxu0 0.0
  %96 = vmatprep.subr.mxu0 0.0
  %97 = vmatpush1.msra.mxu0 0.0
  %98 = vmatprep.subr.mxu0 0.0
  %99 = vmatpush1.msra.mxu0 0.0
  %100 = vmatprep.subr.mxu0 0.0
  %101 = vmatpush1.msra.mxu0 0.0
  %102 = vmatprep.subr.mxu0 0.0
  %103 = vmatpush1.msra.mxu0 0.0
  %104 = vmatprep.subr.mxu0 0.0
  %105 = vmatpush1.msra.mxu0 0.0
  %106 = vmatprep.subr.mxu0 0.0
  %107 = vmatpush1.msra.mxu0 0.0
  %108 = vmatprep.subr.mxu0 0.0
  %109 = vmatpush1.msra.mxu0 0.0
  %110 = vmatprep.subr.mxu0 0.0
  %111 = vmatpush1.msra.mxu0 0.0
  %112 = vmatprep.subr.mxu0 0.0
  %113 = vmatpush1.msra.mxu0 0.0
  %114 = vmatprep.subr.mxu0 0.0
  %115 = vmatpush1.msra.mxu0 0.0
  %116 = vmatprep.subr.mxu0 0.0
  %117 = vmatpush1.msra.mxu0 0.0
  %118 = vmatprep.subr.mxu0 0.0
  %119 = vmatpush1.msra.mxu0 0.0
  %120 = vmatprep.subr.mxu0 0.0
  %121 = vmatpush1.msra.mxu0 0.0
  %122 = vmatprep.subr.mxu0 0.0
  %123 = vmatpush1.msra.mxu0 0.0
  %124 = vmatprep.subr.mxu0 0.0
  %125 = vmatpush1.msra.mxu0 0.0
  %126 = vmatprep.subr.mxu0 0.0
  %127 = vmatpush1.msra.mxu0 0.0
  %128 = vmatprep.subr.mxu0 0.0
  %129 = vmatpush1.msra.mxu0 0.0
  %130 = vmatprep.subr.mxu0 0.0
  %131 = vmatpush1.msra.mxu0 0.0
  %132 = vmatprep.subr.mxu0 0.0
  %133 = vmatpush1.msra.mxu0 0.0
  %134 = vmatprep.mubr.f32.mxu0 0.0
  %135 = vmatmul.mubr.f32.gmra.mrb[0].mxu0 %v65
  %v136 = vpop.f32.mrb[0].mxu0
  %v137 = vadd.f32 %v56, %v136
  %v138 = vpop.f32.mrb[0].mxu0
  %139 = vmatprep.mubr.f32.mxu0 0.0
  %140 = vmatmul.mubr.f32.gmra.mrb[0].mxu0 %v68
  %v141 = vpop.f32.mrb[0].mxu0
  %v142 = vadd.f32 %v61, %v141
  %v143 = vpop.f32.mrb[0].mxu0
  %144 = vdwg.mxu0
  %v145 = vmax.f32 %v137, 0.0
  %v146 = vmax.f32 %v142, 0.0
  %v147 = vld [vmem:[%s4] sm:$0xff]
  %v148 = vld [vmem:[%s5] sm:$0xff]
  %150 = vset.pattern.permute.xlu0 0
  %151 = vperm.xlu0 %150, %v148
  %v152 = vpop.permute.xlu0 %151
  %v155 = vsel %vm63, %v147, 0
  %157 = vmatprep.subr.mxu0 0.0
  %158 = vmatpush1.msra.mxu0 %v145
  %159 = vmatprep.subr.mxu0 0.0
  %160 = vmatpush1.msra.mxu0 %v146
  %161 = vmatprep.subr.mxu0 0.0
  %162 = vmatpush1.msra.mxu0 0.0
  %163 = vmatprep.subr.mxu0 0.0
  %164 = vmatpush1.msra.mxu0 0.0
  %165 = vmatprep.subr.mxu0 0.0
  %166 = vmatpush1.msra.mxu0 0.0
  %167 = vmatprep.subr.mxu0 0.0
  %168 = vmatpush1.msra.mxu0 0.0
  %169 = vmatprep.subr.mxu0 0.0
  %170 = vmatpush1.msra.mxu0 0.0
  %171 = vmatprep.subr.mxu0 0.0
  %172 = vmatpush1.msra.mxu0 0.0
  %173 = vmatprep.subr.mxu0 0.0
  %174 = vmatpush1.msra.mxu0 0.0
  %175 = vmatprep.subr.mxu0 0.0
  %176 = vmatpush1.msra.mxu0 0.0
  %177 = vmatprep.subr.mxu0 0.0
  %178 = vmatpush1.msra.mxu0 0.0
  %179 = vmatprep.subr.mxu0 0.0
  %180 = vmatpush1.msra.mxu0 0.0
  %181 = vmatprep.subr.mxu0 0.0
  %182 = vmatpush1.msra.mxu0 0.0
  %183 = vmatprep.subr.mxu0 0.0
  %184 = vmatpush1.msra.mxu0 0.0
  %185 = vmatprep.subr.mxu0 0.0
  %186 = vmatpush1.msra.mxu0 0.0
  %187 = vmatprep.subr.mxu0 0.0
  %188 = vmatpush1.msra.mxu0 0.0
  %189 = vmatprep.subr.mxu0 0.0
  %190 = vmatpush1.msra.mxu0 0.0
  %191 = vmatprep.subr.mxu0 0.0
  %192 = vmatpush1.msra.mxu0 0.0
  %193 = vmatprep.subr.mxu0 0.0
  %194 = vmatpush1.msra.mxu0 0.0
  %195 = vmatprep.subr.mxu0 0.0
  %196 = vmatpush1.msra.mxu0 0.0
  %197 = vmatprep.subr.mxu0 0.0
  %198 = vmatpush1.msra.mxu0 0.0
  %199 = vmatprep.subr.mxu0 0.0
  %200 = vmatpush1.msra.mxu0 0.0
  %201 = vmatprep.subr.mxu0 0.0
  %202 = vmatpush1.msra.mxu0 0.0
  %203 = vmatprep.subr.mxu0 0.0
  %204 = vmatpush1.msra.mxu0 0.0
  %205 = vmatprep.subr.mxu0 0.0
  %206 = vmatpush1.msra.mxu0 0.0
  %207 = vmatprep.subr.mxu0 0.0
  %208 = vmatpush1.msra.mxu0 0.0
  %209 = vmatprep.subr.mxu0 0.0
  %210 = vmatpush1.msra.mxu0 0.0
  %211 = vmatprep.subr.mxu0 0.0
  %212 = vmatpush1.msra.mxu0 0.0
  %213 = vmatprep.subr.mxu0 0.0
  %214 = vmatpush1.msra.mxu0 0.0
  %215 = vmatprep.subr.mxu0 0.0
  %216 = vmatpush1.msra.mxu0 0.0
  %217 = vmatprep.subr.mxu0 0.0
  %218 = vmatpush1.msra.mxu0 0.0
  %219 = vmatprep.subr.mxu0 0.0
  %220 = vmatpush1.msra.mxu0 0.0
  %221 = vmatprep.mubr.f32.mxu0 0.0
  %222 = vmatmul.mubr.f32.gmra.mrb[0].mxu0 %v155
  %v223 = vpop.f32.mrb[0].mxu0
  %v224 = vadd.f32 %v152, %v223
  %v225 = vpop.f32.mrb[0].mxu0
  %226 = vdwg.mxu0
  %v227 = vmax.f32 %v224, 0.0
  %v228 = vld [vmem:[%s6] sm:$0xf]
  %v229 = vld [vmem:[%s7] sm:$0xf]
  %231 = vset.pattern.permute.xlu0 0
  %232 = vperm.xlu0 %231, %v229
  %v233 = vpop.permute.xlu0 %232
  %vm235 = vcmask 64512
  %v237 = vsel %vm235, %v228, 0
  %239 = vmatprep.subr.mxu0 0.0
  %240 = vmatpush1.msra.mxu0 %v227
  %241 = vmatprep.subr.mxu0 0.0
  %242 = vmatpush1.msra.mxu0 0.0
  %243 = vmatprep.subr.mxu0 0.0
  %244 = vmatpush1.msra.mxu0 0.0
  %245 = vmatprep.subr.mxu0 0.0
  %246 = vmatpush1.msra.mxu0 0.0
  %247 = vmatprep.subr.mxu0 0.0
  %248 = vmatpush1.msra.mxu0 0.0
  %249 = vmatprep.subr.mxu0 0.0
  %250 = vmatpush1.msra.mxu0 0.0
  %251 = vmatprep.subr.mxu0 0.0
  %252 = vmatpush1.msra.mxu0 0.0
  %253 = vmatprep.subr.mxu0 0.0
  %254 = vmatpush1.msra.mxu0 0.0
  %255 = vmatprep.subr.mxu0 0.0
  %256 = vmatpush1.msra.mxu0 0.0
  %257 = vmatprep.subr.mxu0 0.0
  %258 = vmatpush1.msra.mxu0 0.0
  %259 = vmatprep.subr.mxu0 0.0
  %260 = vmatpush1.msra.mxu0 0.0
  %261 = vmatprep.subr.mxu0 0.0
  %262 = vmatpush1.msra.mxu0 0.0
  %263 = vmatprep.subr.mxu0 0.0
  %264 = vmatpush1.msra.mxu0 0.0
  %265 = vmatprep.subr.mxu0 0.0
  %266 = vmatpush1.msra.mxu0 0.0
  %267 = vmatprep.subr.mxu0 0.0
  %268 = vmatpush1.msra.mxu0 0.0
  %269 = vmatprep.subr.mxu0 0.0
  %270 = vmatpush1.msra.mxu0 0.0
  %271 = vmatprep.subr.mxu0 0.0
  %272 = vmatpush1.msra.mxu0 0.0
  %273 = vmatprep.subr.mxu0 0.0
  %274 = vmatpush1.msra.mxu0 0.0
  %275 = vmatprep.subr.mxu0 0.0
  %276 = vmatpush1.msra.mxu0 0.0
  %277 = vmatprep.subr.mxu0 0.0
  %278 = vmatpush1.msra.mxu0 0.0
  %279 = vmatprep.subr.mxu0 0.0
  %280 = vmatpush1.msra.mxu0 0.0
  %281 = vmatprep.subr.mxu0 0.0
  %282 = vmatpush1.msra.mxu0 0.0
  %283 = vmatprep.subr.mxu0 0.0
  %284 = vmatpush1.msra.mxu0 0.0
  %285 = vmatprep.subr.mxu0 0.0
  %286 = vmatpush1.msra.mxu0 0.0
  %287 = vmatprep.subr.mxu0 0.0
  %288 = vmatpush1.msra.mxu0 0.0
  %289 = vmatprep.subr.mxu0 0.0
  %290 = vmatpush1.msra.mxu0 0.0
  %291 = vmatprep.subr.mxu0 0.0
  %292 = vmatpush1.msra.mxu0 0.0
  %293 = vmatprep.subr.mxu0 0.0
  %294 = vmatpush1.msra.mxu0 0.0
  %295 = vmatprep.subr.mxu0 0.0
  %296 = vmatpush1.msra.mxu0 0.0
  %297 = vmatprep.subr.mxu0 0.0
  %298 = vmatpush1.msra.mxu0 0.0
  %299 = vmatprep.subr.mxu0 0.0
  %300 = vmatpush1.msra.mxu0 0.0
  %301 = vmatprep.subr.mxu0 0.0
  %302 = vmatpush1.msra.mxu0 0.0
  %303 = vmatprep.mubr.f32.mxu0 0.0
  %304 = vmatmul.mubr.f32.gmra.mrb[0].mxu0 %v237
  %v305 = vpop.f32.mrb[0].mxu0
  %v306 = vadd.f32 %v233, %v305
  %v307 = vpop.f32.mrb[0].mxu0
  %308 = vdwg.mxu0
  %v309 = vmax.f32 %v306, 0.0
  %v310 = vld [vmem:[%s8] sm:$0xff]
  %312 = vset.pattern.permute.xlu0 0
  %313 = vperm.xlu0 %312, %v310
  %v314 = vpop.permute.xlu0 %313
  %v316 = vmul.f32 %v48, %v314
  %v317 = vrot.slane %v316, 4
  %v318 = vadd.f32 %v316, %v317
  %v319 = vrot.slane %v318, 2
  %v320 = vadd.f32 %v318, %v319
  %v321 = vrot.slane %v320, 1
  %v322 = vadd.f32 %v320, %v321
  %v323 = vld [vmem:[%s9] sm:$0xf]
  %325 = vset.pattern.permute.xlu0 0
  %326 = vperm.xlu0 %325, %v323
  %v327 = vpop.permute.xlu0 %326
  %v329 = vmul.f32 %v309, %v327
  %vm330 = vcmask 1043456
  %v331 = vsel %vm330, %v329, 0.0
  %v332 = vrot.slane %v331, 4
  %v333 = vadd.f32 %v331, %v332
  %v334 = vrot.slane %v333, 2
  %v335 = vadd.f32 %v333, %v334
  %v336 = vrot.slane %v335, 1
  %v337 = vadd.f32 %v335, %v336
  %v338 = vadd.f32 %v322, %v337
  %v339 = vld [vmem:[#allocation2] sm:$0x1]
  %341 = vset.pattern.permute.xlu0 0
  %342 = vperm.xlu0 %341, %v339
  %v343 = vpop.permute.xlu0 %342
  %v345 = vlaneseq
  %v346 = vshrl.u32 %v345, 7
  %v347 = vsub.s32 0, %v346
  %v348 = vrot.slane %v343, %v347
  %v349 = vadd.f32 %v338, %v348
  %v350 = vxor.u32 %v349, 2147483648
  %v351 = vmul.f32 %v350, 1.442695
  %v352 = vpow.pop %v351
  %v353 = vadd.f32 %v352, 1.0
  %v354 = vrcp.pop %v353
  %v355 = vmul.f32 1.0, %v354
  %356 = vst [vmem:[%s11] sm:$0x1] %v355
  // Predicated region
  $region46: #{ncf_forward.1} parent=0 // pred_check
    _
  $region47: #{ncf_forward.1} parent=0 // pred_check_branch
    %358 = sbr.rel (0) target = $region49
  $region48: #{ncf_forward.1} parent=0 // pred_region
    _
  $region49: #{ncf_forward.1} parent=0 // pred_fallthru
    _
  // Predicated region
  $region50: #{ncf_forward.1} parent=0 // pred_check
    _
  $region51: #{ncf_forward.1} parent=0 // pred_check_branch
    %360 = sbr.rel (0) target = $region53
  $region52: #{ncf_forward.1} parent=0 // pred_region
    _
  $region53: #{ncf_forward.1} parent=0 // pred_fallthru
    _

</llo_original>
